<compile_context>
chip_gen: v5e
topology: v5e:2x2
jax: 0.10.0
libtpu: 0.0.40
codegen_flags: <defaults>
</compile_context>

<pallas_src>
import jax
import jax.numpy as jnp
from jax.experimental import pallas as pl
from jax.experimental.pallas import tpu as pltpu


def _round_up(x, m):
    return ((x + m - 1) // m) * m


def _linear_bias_kernel(x_ref, w_ref, b_ref, o_ref):
    # x_ref: [TM, Hp] bf16   w_ref: [Hp, TN] bf16
    # b_ref: [8, TN]  f32    o_ref: [TM, TN]
    acc = jnp.dot(x_ref[...], w_ref[...], preferred_element_type=jnp.float32)
    o_ref[...] = (acc + b_ref[0:1, :]).astype(o_ref.dtype)


def pallas_linear(x2d, w, b, *, tm_target=256, tn_target=512):
    """y = x2d @ w + b via a tiled Pallas TPU kernel.

    x2d: [M, H]   w: [H, N]   b: [N]   ->   y: [M, N] in x2d.dtype
    """
    M, H = x2d.shape
    N = w.shape[1]
    out_dtype = x2d.dtype

    TM = min(tm_target, _round_up(M, 8))
    TN = min(tn_target, _round_up(N, 128))
    M_pad = _round_up(M, TM)
    N_pad = _round_up(N, TN)
    H_pad = _round_up(H, 128)

    # Pad to lane/sublane-dense shapes; zero padding on the K axis is exact.
    x_p = jnp.pad(x2d, ((0, M_pad - M), (0, H_pad - H))).astype(jnp.bfloat16)
    w_p = jnp.pad(w, ((0, H_pad - H), (0, N_pad - N))).astype(jnp.bfloat16)
    b_p = jnp.pad(b.astype(jnp.float32), (0, N_pad - N))
    b_slab = jnp.broadcast_to(b_p[None, :], (8, N_pad))  # full-sublane bias tile

    grid = (M_pad // TM, N_pad // TN)  # out-axis innermost -> X tile reused

    out_bytes = M_pad * N_pad * jnp.dtype(out_dtype).itemsize
    cost = pl.CostEstimate(
        flops=2 * M_pad * H_pad * N_pad,
        transcendentals=0,
        bytes_accessed=(x_p.size * 2) + (w_p.size * 2) * grid[0] + out_bytes,
    )

    out2d = pl.pallas_call(
        _linear_bias_kernel,
        out_shape=jax.ShapeDtypeStruct((M_pad, N_pad), out_dtype),
        grid=grid,
        in_specs=[
            pl.BlockSpec((TM, H_pad), lambda i, j: (i, 0)),
            pl.BlockSpec((H_pad, TN), lambda i, j: (0, j)),
            pl.BlockSpec((8, TN), lambda i, j: (0, j)),
        ],
        out_specs=pl.BlockSpec((TM, TN), lambda i, j: (i, j)),
        compiler_params=pltpu.CompilerParams(
            dimension_semantics=("parallel", "parallel")),
        cost_estimate=cost,
    )(x_p, w_p, b_slab)

    return out2d[:M, :N]


def encoder_forward(enc_x, W_enc, b_enc):
    """Minimal concrete Encoder: per-position dense projection."""
    B, S, D = enc_x.shape
    H = W_enc.shape[1]
    out = pallas_linear(enc_x.reshape(B * S, D), W_enc, b_enc)
    return out.reshape(B, S, H)


def decoder_init_state(enc_all_outputs, *args):
    """Minimal concrete Decoder.init_state: pass encoder outputs through."""
    return enc_all_outputs


def decoder_forward(dec_X, state, W_dec, b_dec):
    """Minimal concrete Decoder.forward: vocab projection, state unchanged."""
    B, S, H = dec_X.shape
    V = W_dec.shape[1]
    logits = pallas_linear(dec_X.reshape(B * S, H), W_dec, b_dec)
    return logits.reshape(B, S, V), state


def encoder_decoder_forward(enc_x, dec_X, W_enc, b_enc, W_dec, b_dec):
    """EncoderDecoder.forward(enc_x, dec_X) -> decoder logits."""
    enc_all_outputs = encoder_forward(enc_x, W_enc, b_enc)
    dec_state = decoder_init_state(enc_all_outputs)
    return decoder_forward(dec_X, dec_state, W_dec, b_dec)[0]


if __name__ == "__main__":
    # Small shapes implied by a seq2seq encoder-decoder step.
    B, S_enc, S_dec = 2, 8, 8
    D_in, H, V = 32, 32, 64

    key = jax.random.PRNGKey(0)
    k1, k2, k3, k4, k5, k6 = jax.random.split(key, 6)

    enc_x = jax.random.normal(k1, (B, S_enc, D_in), dtype=jnp.float32)
    dec_X = jax.random.normal(k2, (B, S_dec, H), dtype=jnp.float32)
    W_enc = jax.random.normal(k3, (D_in, H), dtype=jnp.float32) * 0.02
    b_enc = jax.random.normal(k4, (H,), dtype=jnp.float32) * 0.02
    W_dec = jax.random.normal(k5, (H, V), dtype=jnp.float32) * 0.02
    b_dec = jax.random.normal(k6, (V,), dtype=jnp.float32) * 0.02

    logits = encoder_decoder_forward(enc_x, dec_X, W_enc, b_enc, W_dec, b_dec)
    jax.block_until_ready(logits)

    # Reference in plain JAX (bf16-matmul tolerance).
    enc_ref = enc_x.reshape(-1, D_in) @ W_enc + b_enc[None, :]
    logits_ref = (dec_X.reshape(-1, H) @ W_dec + b_dec[None, :]).reshape(B, S_dec, V)

    assert logits.shape == (B, S_dec, V)
    assert jnp.allclose(logits, logits_ref, atol=2e-2, rtol=2e-2)

    enc_out = encoder_forward(enc_x, W_enc, b_enc)
    jax.block_until_ready(enc_out)
    assert enc_out.shape == (B, S_enc, H)
    assert jnp.allclose(enc_out.reshape(-1, H), enc_ref, atol=2e-2, rtol=2e-2)

    print("KERNEL_OK")
</pallas_src>

<mosaic_0001>
module attributes {stable_mosaic.version = 11 : i64} {
  func.func @_linear_bias_kernel(%arg0: i32, %arg1: i32, %arg2: memref<16x128xbf16, #tpu.memory_space<vmem>>, %arg3: memref<128x128xbf16, #tpu.memory_space<vmem>>, %arg4: memref<8x128xf32, #tpu.memory_space<vmem>>, %arg5: memref<16x128xf32, #tpu.memory_space<vmem>>) attributes {dimension_semantics = [#tpu.dimension_semantics<parallel>, #tpu.dimension_semantics<parallel>], iteration_bounds = array<i64: 1, 1>, scalar_prefetch = 0 : i64, scratch_operands = 0 : i64, tpu.core_type = #tpu.core_type<tc>, window_params = [{transform_indices = @transform_0, window_bounds = array<i64: 16, 128>}, {transform_indices = @transform_1, window_bounds = array<i64: 128, 128>}, {transform_indices = @transform_2, window_bounds = array<i64: 8, 128>}, {transform_indices = @transform_3, window_bounds = array<i64: 16, 128>}]} {
    %c0 = arith.constant 0 : index
    %c0_0 = arith.constant 0 : index
    %0 = vector.load %arg2[%c0, %c0_0] : memref<16x128xbf16, #tpu.memory_space<vmem>>, vector<16x128xbf16>
    %c0_1 = arith.constant 0 : index
    %c0_2 = arith.constant 0 : index
    %1 = vector.load %arg3[%c0_1, %c0_2] : memref<128x128xbf16, #tpu.memory_space<vmem>>, vector<128x128xbf16>
    %cst = arith.constant dense<0.000000e+00> : vector<16x128xf32>
    %2 = tpu.matmul %0, %1, %cst {dimension_numbers = #tpu.dot_dimension_numbers<[1], [0], [0], [1], [0, 0, 1, 1], [], []>} : vector<16x128xbf16>, vector<128x128xbf16>, vector<16x128xf32> -> vector<16x128xf32>
    %c0_3 = arith.constant 0 : index
    %c0_4 = arith.constant 0 : index
    %3 = vector.load %arg4[%c0_3, %c0_4] : memref<8x128xf32, #tpu.memory_space<vmem>>, vector<1x128xf32>
    %4 = vector.broadcast %3 : vector<1x128xf32> to vector<16x128xf32>
    %5 = arith.addf %2, %4 : vector<16x128xf32>
    %c0_5 = arith.constant 0 : index
    %c0_6 = arith.constant 0 : index
    %6 = vector.load %arg5[%c0_5, %c0_6] : memref<16x128xf32, #tpu.memory_space<vmem>>, vector<16x128xf32>
    tpu.vector_store %arg5[%c0_5, %c0_6], %5 {strides = array<i32>} : memref<16x128xf32, #tpu.memory_space<vmem>>, vector<16x128xf32>,
    return
  }
  func.func @transform_0(%arg0: i32, %arg1: i32) -> (i32, i32) {
    %c0_i32 = arith.constant 0 : i32
    %c0_i32_0 = arith.constant 0 : i32
    return %arg0, %c0_i32 : i32, i32
  }
  func.func @transform_1(%arg0: i32, %arg1: i32) -> (i32, i32) {
    %c0_i32 = arith.constant 0 : i32
    %c0_i32_0 = arith.constant 0 : i32
    return %c0_i32, %arg1 : i32, i32
  }
  func.func @transform_2(%arg0: i32, %arg1: i32) -> (i32, i32) {
    %c0_i32 = arith.constant 0 : i32
    %c0_i32_0 = arith.constant 0 : i32
    return %c0_i32, %arg1 : i32, i32
  }
  func.func @transform_3(%arg0: i32, %arg1: i32) -> (i32, i32) {
    %c0_i32 = arith.constant 0 : i32
    return %arg0, %arg1 : i32, i32
  }
}

</mosaic_0001>

<llo_original>
// kernel: tpu_custom_call.1
$region0: #{tpu_custom_call.1}
  #allocation0 [shape = 'u32[]', space=smem, size = 0x4, offset = 0x4, fixed_abs, tag = 'smem constant byte address 0x4 - core index']
  #allocation1 [shape = 'u32[72,128]{1,0:T(1,128)}', space=vmem, size = 0x9000, scoped, tag = 'internal scratch']
  %s0 = inlined_call_operand.hbm [shape: bf16[16,128], index: 0, kind: input, shape index: {}]
  %s1 = inlined_call_operand.hbm [shape: bf16[128,128], index: 1, kind: input, shape index: {}]
  %s2 = inlined_call_operand.hbm [shape: f32[8,128], index: 2, kind: input, shape index: {}]
  %s3 = inlined_call_operand.hbm [shape: f32[16,128], index: 3, kind: output, shape index: {}]
  %s4 = sld [smem:[#allocation0]]
  $region34: #{tpu_custom_call.1} parent=0
    _
  %s6 = ssub.s32 1, %s4
  %s7 = scalar_select 0, %s6, %s4
  $region1: #{tpu_custom_call.1} parent=0
    #allocation2 [shape = 'u8[4096]{0}', space=vmem, size = 0x1000, scoped, tag = 'input window, operand 0, single buffered']
    #allocation3 [shape = 's32[1]{0}', space=sflag, size = 0x4, scoped, tag = 'scoped memory for tpu_custom_call.1']
    #allocation4 [shape = 's32[1]{0}', space=sflag, size = 0x4, scoped, tag = 'scoped memory for tpu_custom_call.1']
    #allocation5 [shape = 'u8[32768]{0}', space=vmem, size = 0x8000, scoped, tag = 'input window, operand 1, single buffered']
    #allocation6 [shape = 's32[1]{0}', space=sflag, size = 0x4, scoped, tag = 'scoped memory for tpu_custom_call.1']
    #allocation7 [shape = 'u8[4096]{0}', space=vmem, size = 0x1000, scoped, tag = 'input window, operand 2, single buffered']
    #allocation8 [shape = 'u8[8192]{0}', space=vmem, size = 0x2000, scoped, tag = 'output window, operand 0, single buffered']
    %8 = vsyncpa [#allocation3], 0
    %9 = vsyncpa [#allocation6], 0
    %10 = vsyncpa [#allocation4], 0
    // Predicated region
    $region2: #{tpu_custom_call.1} parent=1 // pred_check
      _
    $region3: #{tpu_custom_call.1} parent=1 // pred_check_branch
      %12 = sbr.rel (0) target = $region5
    $region4: #{tpu_custom_call.1} parent=1 // pred_region
      %14 = vsyncadd [#allocation3], 0
      %s15 = sshll.u32 %s0, 4
      %s16 = int_to_ptr.hbm [resolvable:$true] %s15
      %s17 = sshll.u32 [#allocation2], 4
      %s18 = int_to_ptr.vmem [resolvable:$true] %s17
      %23 = dma.hbm_to_vmem [thread:$0]  %s16, 128, %s18, [#allocation3], 64, 64, 4
    $region5: #{tpu_custom_call.1} parent=1 // pred_fallthru
      _
    // Predicated region
    $region6: #{tpu_custom_call.1} parent=1 // pred_check
      _
    $region7: #{tpu_custom_call.1} parent=1 // pred_check_branch
      %25 = sbr.rel (0) target = $region9
    $region8: #{tpu_custom_call.1} parent=1 // pred_region
      %27 = vsyncadd [#allocation6], 0
      %s28 = sshll.u32 %s1, 4
      %s29 = int_to_ptr.hbm [resolvable:$true] %s28
      %s30 = sshll.u32 [#allocation5], 4
      %s31 = int_to_ptr.vmem [resolvable:$true] %s30
      %36 = dma.hbm_to_vmem [thread:$0]  %s29, 1024, %s31, [#allocation6], 64, 64, 4
    $region9: #{tpu_custom_call.1} parent=1 // pred_fallthru
      _
    // Predicated region
    $region10: #{tpu_custom_call.1} parent=1 // pred_check
      _
    $region11: #{tpu_custom_call.1} parent=1 // pred_check_branch
      %38 = sbr.rel (0) target = $region13
    $region12: #{tpu_custom_call.1} parent=1 // pred_region
      %40 = vsyncadd [#allocation6], 0
      %s42 = sshll.u32 %s2, 4
      %s43 = int_to_ptr.hbm [resolvable:$true] %s42
      %s44 = sshll.u32 [#allocation7], 4
      %s45 = int_to_ptr.vmem [resolvable:$true] %s44
      %47 = dma.hbm_to_vmem [thread:$0]  %s43, 128, %s45, [#allocation6]
    $region13: #{tpu_custom_call.1} parent=1 // pred_fallthru
      _
    // Predicated region
    $region14: #{tpu_custom_call.1} parent=1 // pred_check
      _
    $region15: #{tpu_custom_call.1} parent=1 // pred_check_branch
      %49 = sbr.rel (0) target = $region17
    $region16: #{tpu_custom_call.1} parent=1 // pred_region
      %51 = dma.done [#allocation3], 128
    $region17: #{tpu_custom_call.1} parent=1 // pred_fallthru
      _
    // Predicated region
    $region18: #{tpu_custom_call.1} parent=1 // pred_check
      _
    $region19: #{tpu_custom_call.1} parent=1 // pred_check_branch
      %53 = sbr.rel (0) target = $region21
    $region20: #{tpu_custom_call.1} parent=1 // pred_region
      %55 = dma.done [#allocation6], 1024
    $region21: #{tpu_custom_call.1} parent=1 // pred_fallthru
      _
    // Predicated region
    $region22: #{tpu_custom_call.1} parent=1 // pred_check
      _
    $region23: #{tpu_custom_call.1} parent=1 // pred_check_branch
      %57 = sbr.rel (0) target = $region25
    $region24: #{tpu_custom_call.1} parent=1 // pred_region
      %59 = dma.done [#allocation6], 128
    $region25: #{tpu_custom_call.1} parent=1 // pred_fallthru
      _
    %v60 = vld [vmem:[#allocation2] sm:$0xf]
    %v61 = vld [vmem:[#allocation2 + $0x4] sm:$0xf]
    %v62 = vld [vmem:[#allocation5] sm:$0xf]
    %v63 = vld [vmem:[#allocation5 + $0x4] sm:$0xf]
    %v64 = vld [vmem:[#allocation5 + $0x8] sm:$0xf]
    %v65 = vld [vmem:[#allocation5 + $0xc] sm:$0xf]
    %v66 = vld [vmem:[#allocation5 + $0x10] sm:$0xf]
    %v67 = vld [vmem:[#allocation5 + $0x14] sm:$0xf]
    %v68 = vld [vmem:[#allocation5 + $0x18] sm:$0xf]
    %v69 = vld [vmem:[#allocation5 + $0x1c] sm:$0xf]
    %v70 = vld [vmem:[#allocation5 + $0x20] sm:$0xf]
    %v71 = vld [vmem:[#allocation5 + $0x24] sm:$0xf]
    %v72 = vld [vmem:[#allocation5 + $0x28] sm:$0xf]
    %v73 = vld [vmem:[#allocation5 + $0x2c] sm:$0xf]
    %v74 = vld [vmem:[#allocation5 + $0x30] sm:$0xf]
    %v75 = vld [vmem:[#allocation5 + $0x34] sm:$0xf]
    %v76 = vld [vmem:[#allocation5 + $0x38] sm:$0xf]
    %v77 = vld [vmem:[#allocation5 + $0x3c] sm:$0xf]
    %v78 = vld [vmem:[#allocation7] sm:$0x1]
    %v79 = vperm.slane %v78, 0
    %v82 = vunpack.c.l.b16 %v60
    %v83 = vunpack.c.l.b16 %v61
    %v84 = vpack.c.b16 %v83, %v82
    %v102 = vunpack.c.l.b16 %v62
    %v103 = vunpack.c.l.b16 %v63
    %v104 = vunpack.c.l.b16 %v64
    %v105 = vunpack.c.l.b16 %v65
    %v106 = vunpack.c.l.b16 %v66
    %v107 = vunpack.c.l.b16 %v67
    %v108 = vunpack.c.l.b16 %v68
    %v109 = vunpack.c.l.b16 %v69
    %v110 = vunpack.c.l.b16 %v70
    %v111 = vunpack.c.l.b16 %v71
    %v112 = vunpack.c.l.b16 %v72
    %v113 = vunpack.c.l.b16 %v73
    %v114 = vunpack.c.l.b16 %v74
    %v115 = vunpack.c.l.b16 %v75
    %v116 = vunpack.c.l.b16 %v76
    %v117 = vunpack.c.l.b16 %v77
    %v118 = vpack.c.b16 %v103, %v102
    %v119 = vpack.c.b16 %v105, %v104
    %v120 = vpack.c.b16 %v107, %v106
    %v121 = vpack.c.b16 %v109, %v108
    %v122 = vpack.c.b16 %v111, %v110
    %v123 = vpack.c.b16 %v113, %v112
    %v124 = vpack.c.b16 %v115, %v114
    %v125 = vpack.c.b16 %v117, %v116
    %134 = vmatpush.bf16.msra.mxu0 %v125
    %135 = vmatpush.bf16.msra.mxu0 %v124
    %136 = vmatpush.bf16.msra.mxu0 %v123
    %137 = vmatpush.bf16.msra.mxu0 %v122
    %138 = vmatpush.bf16.msra.mxu0 %v121
    %139 = vmatpush.bf16.msra.mxu0 %v120
    %140 = vmatpush.bf16.msra.mxu0 %v119
    %141 = vmatpush.bf16.msra.mxu0 %v118
    %142 = vmatmul.bf16.gmra.mxu0 %v84
    %v143 = vpop.f32.mrf.mxu0
    %v144 = vadd.f32 %v79, %v143
    %v145 = vpop.f32.mrf.mxu0
    %v146 = vadd.f32 %v79, %v145
    %147 = vdwg.mxu0
    %148 = vst [vmem:[#allocation8] sm:$0xff] %v144
    %149 = vst [vmem:[#allocation8 + $0x8] sm:$0xff] %v146
    // Predicated region
    $region26: #{tpu_custom_call.1} parent=1 // pred_check
      _
    $region27: #{tpu_custom_call.1} parent=1 // pred_check_branch
      %151 = sbr.rel (0) target = $region29
    $region28: #{tpu_custom_call.1} parent=1 // pred_region
      %153 = vsyncadd [#allocation4], 0
      %s154 = sshll.u32 [#allocation8], 4
      %s155 = int_to_ptr.vmem [resolvable:$true] %s154
      %s156 = sshll.u32 %s3, 4
      %s157 = int_to_ptr.hbm [resolvable:$true] %s156
      %162 = dma.vmem_to_hbm [thread:$0]  %s155, 256, %s157, [#allocation4], 128, 128, 8
    $region29: #{tpu_custom_call.1} parent=1 // pred_fallthru
      _
    // Predicated region
    $region30: #{tpu_custom_call.1} parent=1 // pred_check
      _
    $region31: #{tpu_custom_call.1} parent=1 // pred_check_branch
      %164 = sbr.rel (0) target = $region33
    $region32: #{tpu_custom_call.1} parent=1 // pred_region
      %166 = dma.done [#allocation4], 256
    $region33: #{tpu_custom_call.1} parent=1 // pred_fallthru
      _
    %167 = vsyncpa [#allocation3], 1
    %168 = vsyncpa [#allocation6], 1
    %169 = vsyncpa [#allocation4], 1

</llo_original>
